<compile_context>
chip_gen: v5e
topology: v5e:2x2
jax: 0.10.0
libtpu: 0.0.40
codegen_flags: <defaults>
</compile_context>

<pallas_src>
import functools

import jax
import jax.numpy as jnp
from jax import lax
from jax.experimental import pallas as pl
from jax.experimental.pallas import tpu as pltpu


# ---------------------------------------------------------------------------
# Generation-aware VMEM budget (v5e/v6e: 128 MiB per TC, v7x: 64 MiB per TC).
# ---------------------------------------------------------------------------
def _vmem_capacity_bytes():
    try:
        info = pltpu.get_tpu_info()
        cap = getattr(info, "vmem_capacity_bytes", None)
        if cap:
            return int(cap)
    except Exception:
        pass
    return 128 * 1024 * 1024


_VMEM_CAP = _vmem_capacity_bytes()
_VMEM_LIMIT = (_VMEM_CAP * 3) // 4            # leave headroom for Mosaic scratch
_BIG_VMEM = _VMEM_CAP >= 100 * 1024 * 1024    # True on v5e / v6e, False on v7x


def _sublane(dtype):
    """Sublane packing of the dtype (f32: 8, bf16: 16, int8/fp8: 32)."""
    return {1: 32, 2: 16, 4: 8}.get(jnp.dtype(dtype).itemsize, 8)


def _pick_tile(dim, target, align):
    """Largest `align`-aligned divisor of `dim` that is <= target, else `dim`."""
    if dim <= target:
        return dim
    t = (target // align) * align
    while t >= align:
        if dim % t == 0:
            return t
        t -= align
    return dim


# ---------------------------------------------------------------------------
# Kernel 1: generic tiled linear  y = x @ w + b
#   x: [M, K], w: [K, N], b: [1, N] ; grid = (M/tm, N/tn, K/tk)
# ---------------------------------------------------------------------------
def _linear_kernel(x_ref, w_ref, b_ref, o_ref, acc_ref):
    k = pl.program_id(2)

    @pl.when(k == 0)
    def _():
        acc_ref[...] = jnp.zeros_like(acc_ref)

    acc_ref[...] += jnp.dot(x_ref[...], w_ref[...],
                            preferred_element_type=jnp.float32)

    @pl.when(k == pl.num_programs(2) - 1)
    def _():
        o_ref[...] = (acc_ref[...] + b_ref[...].astype(jnp.float32)
                      ).astype(o_ref.dtype)


def linear(x, w, b):
    M, K = x.shape
    K2, N = w.shape
    assert K == K2
    sub = _sublane(x.dtype)
    tm = _pick_tile(M, 512, sub)
    tn = _pick_tile(N, N if _BIG_VMEM else 512, 128)
    tk = _pick_tile(K, 1024 if _BIG_VMEM else 512, 128)
    grid = (M // tm, N // tn, K // tk)
    return pl.pallas_call(
        _linear_kernel,
        out_shape=jax.ShapeDtypeStruct((M, N), x.dtype),
        grid=grid,
        in_specs=[
            pl.BlockSpec((tm, tk), lambda i, j, k: (i, k)),
            pl.BlockSpec((tk, tn), lambda i, j, k: (k, j)),
            pl.BlockSpec((1, tn), lambda i, j, k: (0, j)),
        ],
        out_specs=pl.BlockSpec((tm, tn), lambda i, j, k: (i, j)),
        scratch_shapes=[pltpu.VMEM((tm, tn), jnp.float32)],
        compiler_params=pltpu.CompilerParams(
            dimension_semantics=("parallel", "parallel", "arbitrary"),
            vmem_limit_bytes=_VMEM_LIMIT),
        cost_estimate=pl.CostEstimate(
            flops=2 * M * N * K,
            transcendentals=0,
            bytes_accessed=(M * K + K * N + M * N) * x.dtype.itemsize),
    )(x, w, b.reshape(1, N))


# ---------------------------------------------------------------------------
# Kernel 2: fused, tiled QKV projection.
#   x: [M, K]; wq/wk/wv: [K, E]; bq/bk/bv: [1, E]  ->  q, k, v: [M, E]
#   x tile is read from HBM once and shared by the three MXU matmuls.
# ---------------------------------------------------------------------------
def _qkv_kernel(x_ref, wq_ref, wk_ref, wv_ref, bq_ref, bk_ref, bv_ref,
                q_ref, k_ref, v_ref, qacc, kacc, vacc):
    kk = pl.program_id(2)

    @pl.when(kk == 0)
    def _():
        qacc[...] = jnp.zeros_like(qacc)
        kacc[...] = jnp.zeros_like(kacc)
        vacc[...] = jnp.zeros_like(vacc)

    x = x_ref[...]
    qacc[...] += jnp.dot(x, wq_ref[...], preferred_element_type=jnp.float32)
    kacc[...] += jnp.dot(x, wk_ref[...], preferred_element_type=jnp.float32)
    vacc[...] += jnp.dot(x, wv_ref[...], preferred_element_type=jnp.float32)

    @pl.when(kk == pl.num_programs(2) - 1)
    def _():
        q_ref[...] = (qacc[...] + bq_ref[...].astype(jnp.float32)).astype(q_ref.dtype)
        k_ref[...] = (kacc[...] + bk_ref[...].astype(jnp.float32)).astype(k_ref.dtype)
        v_ref[...] = (vacc[...] + bv_ref[...].astype(jnp.float32)).astype(v_ref.dtype)


def qkv_projection(x, wq, wk, wv, bq, bk, bv):
    M, K = x.shape
    N = wq.shape[1]
    sub = _sublane(x.dtype)
    tm = _pick_tile(M, 512, sub)
    # On 128 MiB chips keep the full output width resident so x is streamed
    # from HBM exactly once; on 64 MiB chips (v7x) cap tn/tk at 512.
    tn = _pick_tile(N, N if _BIG_VMEM else 512, 128)
    tk = _pick_tile(K, 1024 if _BIG_VMEM else 512, 128)
    grid = (M // tm, N // tn, K // tk)

    x_spec = pl.BlockSpec((tm, tk), lambda i, j, k: (i, k))
    w_spec = pl.BlockSpec((tk, tn), lambda i, j, k: (k, j))
    b_spec = pl.BlockSpec((1, tn), lambda i, j, k: (0, j))
    o_spec = pl.BlockSpec((tm, tn), lambda i, j, k: (i, j))
    out = jax.ShapeDtypeStruct((M, N), x.dtype)

    return pl.pallas_call(
        _qkv_kernel,
        out_shape=(out, out, out),
        grid=grid,
        in_specs=[x_spec, w_spec, w_spec, w_spec, b_spec, b_spec, b_spec],
        out_specs=(o_spec, o_spec, o_spec),
        scratch_shapes=[pltpu.VMEM((tm, tn), jnp.float32)] * 3,
        compiler_params=pltpu.CompilerParams(
            dimension_semantics=("parallel", "parallel", "arbitrary"),
            vmem_limit_bytes=_VMEM_LIMIT),
        cost_estimate=pl.CostEstimate(
            flops=3 * 2 * M * N * K,
            transcendentals=0,
            bytes_accessed=(M * K + 3 * K * N + 3 * M * N) * x.dtype.itemsize),
    )(x, wq, wk, wv, bq.reshape(1, N), bk.reshape(1, N), bv.reshape(1, N))


# ---------------------------------------------------------------------------
# Kernel 3: flash-style multi-head attention.
#   q/k/v/out stay in (B, T, E) layout; the per-head split is expressed
#   through BlockSpec index_maps (no transposes).  The grid tiles queries (tq,
#   parallel) and keys/values (ts, arbitrary) with online-softmax m/l/acc
#   scratch, so the (T, S) score matrix is never materialized.  `hb` heads are
#   processed per step so the single output store is lane-dense.  q is already
#   scaled (folded into the Q weights at parameter-prep time).
# ---------------------------------------------------------------------------
def _attn_kernel(q_ref, k_ref, v_ref, o_ref, m_sc, l_sc, acc_sc, *,
                 heads_per_block, head_dim):
    si = pl.program_id(3)

    @pl.when(si == 0)
    def _():
        m_sc[...] = jnp.full_like(m_sc, -jnp.inf)
        l_sc[...] = jnp.zeros_like(l_sc)
        acc_sc[...] = jnp.zeros_like(acc_sc)

    for j in range(heads_per_block):          # static unrolled (hb is small)
        sl = slice(j * head_dim, (j + 1) * head_dim)
        q = q_ref[0, :, sl]                   # (tq, Dh)
        k = k_ref[0, :, sl]                   # (ts, Dh)
        v = v_ref[0, :, sl]                   # (ts, Dh)
        # Contract last dims directly (no k.T / XLU transpose before the MXU).
        s = lax.dot_general(q, k, (((1,), (1,)), ((), ())),
                            preferred_element_type=jnp.float32)   # (tq, ts)
        m_prev = m_sc[j]                                          # (tq, 1)
        m_new = jnp.maximum(m_prev, jnp.max(s, axis=-1, keepdims=True))
        alpha = jnp.exp(m_prev - m_new)
        p = jnp.exp(s - m_new)                                    # unnormalized
        l_sc[j] = alpha * l_sc[j] + jnp.sum(p, axis=-1, keepdims=True)
        acc_sc[j] = alpha * acc_sc[j] + jnp.dot(
            p.astype(v.dtype), v, preferred_element_type=jnp.float32)
        m_sc[j] = m_new

    @pl.when(si == pl.num_programs(3) - 1)
    def _():
        # Normalize AFTER the PV matmul (T*Dh divides instead of T*S) and emit
        # a single lane-dense store for all heads of this block.
        outs = [(acc_sc[j] / l_sc[j]).astype(o_ref.dtype)
                for j in range(heads_per_block)]
        o_ref[0, :, :] = jnp.concatenate(outs, axis=-1)


def _pick_heads_per_block(num_heads, head_dim):
    """Smallest head group whose lane width is a multiple of 128."""
    for hb in range(1, num_heads + 1):
        if num_heads % hb == 0 and (hb * head_dim) % 128 == 0:
            return hb
    return num_heads      # full-E block: always layout-valid


def multihead_attention(q, k, v, num_heads):
    B, T, E = q.shape
    S = k.shape[1]
    head_dim = E // num_heads
    sub = _sublane(q.dtype)

    hb = _pick_heads_per_block(num_heads, head_dim)
    bw = hb * head_dim
    n_groups = num_heads // hb

    # Query / key tiling: keep q+o blocks small enough to pipeline and shard
    # across TensorCores; tile S so VMEM is O(tq * ts), not O(T * S).
    tq = _pick_tile(T, 256, sub)
    ts = _pick_tile(S, 512, sub)

    kernel = functools.partial(_attn_kernel, heads_per_block=hb,
                               head_dim=head_dim)
    q_idx = lambda b, g, qi, si: (b, qi, g)
    kv_idx = lambda b, g, qi, si: (b, si, g)

    return pl.pallas_call(
        kernel,
        out_shape=jax.ShapeDtypeStruct((B, T, E), q.dtype),
        grid=(B, n_groups, T // tq, S // ts),
        in_specs=[pl.BlockSpec((1, tq, bw), q_idx),
                  pl.BlockSpec((1, ts, bw), kv_idx),
                  pl.BlockSpec((1, ts, bw), kv_idx)],
        out_specs=pl.BlockSpec((1, tq, bw), q_idx),
        scratch_shapes=[pltpu.VMEM((hb, tq, 1), jnp.float32),
                        pltpu.VMEM((hb, tq, 1), jnp.float32),
                        pltpu.VMEM((hb, tq, head_dim), jnp.float32)],
        compiler_params=pltpu.CompilerParams(
            dimension_semantics=("parallel", "parallel", "parallel",
                                 "arbitrary"),
            vmem_limit_bytes=_VMEM_LIMIT),
        cost_estimate=pl.CostEstimate(
            flops=4 * B * num_heads * T * S * head_dim,
            transcendentals=B * num_heads * T * S,
            bytes_accessed=(2 * B * T * E + 2 * B * S * E) * q.dtype.itemsize),
    )(q, k, v)


# ---------------------------------------------------------------------------
# Parameter prep: fold q scaling (head_dim**-0.5) into the Q weight/bias once.
# (Exact: (xW + b) * s == x(Ws) + (bs).)
# ---------------------------------------------------------------------------
def prepare_bart_attention_params(params, num_heads):
    E = params["q_w"].shape[0]
    scaling = (E // num_heads) ** (-0.5)
    out = dict(params)
    out["q_w"] = params["q_w"] * scaling
    out["q_b"] = params["q_b"] * scaling
    return out


# ---------------------------------------------------------------------------
# BartAttention forward (self-attention, no attention_mask / layer_head_mask,
# output_attentions=False, dropout is a no-op in eval / p=0.0).
# `params` must come from prepare_bart_attention_params (scaling pre-folded).
# ---------------------------------------------------------------------------
def bart_attention_forward(hidden_states, params, num_heads):
    B, T, E = hidden_states.shape
    x2d = hidden_states.reshape(B * T, E)

    q, k, v = qkv_projection(x2d, params["q_w"], params["k_w"], params["v_w"],
                             params["q_b"], params["k_b"], params["v_b"])

    # (B*T, E) -> (B, T, E) is a free reshape; no head transposes anywhere.
    q = q.reshape(B, T, E)
    k = k.reshape(B, T, E)
    v = v.reshape(B, T, E)

    attn = multihead_attention(q, k, v, num_heads)      # (B, T, E)

    out = linear(attn.reshape(B * T, E), params["o_w"], params["o_b"])
    return out.reshape(B, T, E)

    # TODO(synk): attention_mask / layer_head_mask / past_key_value (decoder
    # cache) / cross-attention branches and dropout are not implemented
    # (defaults: None / eval). LoraLinear path not translated.


# ---------------------------------------------------------------------------
# Pure-JAX reference for a sanity check.
# ---------------------------------------------------------------------------
def bart_attention_ref(hidden_states, params, num_heads):
    B, T, E = hidden_states.shape
    head_dim = E // num_heads
    scaling = head_dim ** (-0.5)
    q = (hidden_states @ params["q_w"] + params["q_b"]) * scaling
    k = hidden_states @ params["k_w"] + params["k_b"]
    v = hidden_states @ params["v_w"] + params["v_b"]

    def sh(t):
        return t.reshape(B, T, num_heads, head_dim).transpose(0, 2, 1, 3)

    qh, kh, vh = sh(q), sh(k), sh(v)
    s = jnp.einsum("bhtd,bhsd->bhts", qh, kh)
    p = jax.nn.softmax(s, axis=-1)
    o = jnp.einsum("bhts,bhsd->bhtd", p, vh)
    o = o.transpose(0, 2, 1, 3).reshape(B, T, E)
    return o @ params["o_w"] + params["o_b"]


if __name__ == "__main__":
    # Small shapes consistent with the module: batch=2, seq=8, embed_dim=32, heads=4
    B, T, E, H = 2, 8, 32, 4

    key = jax.random.PRNGKey(0)
    keys = jax.random.split(key, 9)

    def w_init(k):
        # weights stored as [in, out] (= PyTorch nn.Linear weight transposed)
        return jax.random.normal(k, (E, E), dtype=jnp.float32) * 0.05

    def b_init(k):
        return jax.random.normal(k, (E,), dtype=jnp.float32) * 0.01

    raw_params = {
        "q_w": w_init(keys[0]), "q_b": b_init(keys[1]),
        "k_w": w_init(keys[2]), "k_b": b_init(keys[3]),
        "v_w": w_init(keys[4]), "v_b": b_init(keys[5]),
        "o_w": w_init(keys[6]), "o_b": b_init(keys[7]),
    }
    hidden_states = jax.random.normal(keys[8], (B, T, E), dtype=jnp.float32)

    # One-time parameter prep (q scaling folded in here, not per forward).
    params = prepare_bart_attention_params(raw_params, H)

    out = bart_attention_forward(hidden_states, params, H)
    out = jax.block_until_ready(out)

    ref = bart_attention_ref(hidden_states, raw_params, H)
    assert out.shape == (B, T, E)
    # Exact softmax normalization (divide after PV matmul) -> tight tolerance.
    assert jnp.allclose(out, ref, atol=1e-4, rtol=1e-4)

    print("KERNEL_OK")
</pallas_src>

<mosaic_0001>
module attributes {stable_mosaic.version = 11 : i64} {
  func.func @_qkv_kernel(%arg0: i32, %arg1: i32, %arg2: i32, %arg3: memref<16x32xf32, #tpu.memory_space<vmem>>, %arg4: memref<32x32xf32, #tpu.memory_space<vmem>>, %arg5: memref<32x32xf32, #tpu.memory_space<vmem>>, %arg6: memref<32x32xf32, #tpu.memory_space<vmem>>, %arg7: memref<1x32xf32, #tpu.memory_space<vmem>>, %arg8: memref<1x32xf32, #tpu.memory_space<vmem>>, %arg9: memref<1x32xf32, #tpu.memory_space<vmem>>, %arg10: memref<16x32xf32, #tpu.memory_space<vmem>>, %arg11: memref<16x32xf32, #tpu.memory_space<vmem>>, %arg12: memref<16x32xf32, #tpu.memory_space<vmem>>, %arg13: memref<16x32xf32, #tpu.memory_space<vmem>>, %arg14: memref<16x32xf32, #tpu.memory_space<vmem>>, %arg15: memref<16x32xf32, #tpu.memory_space<vmem>>) attributes {dimension_semantics = [#tpu.dimension_semantics<parallel>, #tpu.dimension_semantics<parallel>, #tpu.dimension_semantics<arbitrary>], iteration_bounds = array<i64: 1, 1, 1>, scalar_prefetch = 0 : i64, scratch_operands = 3 : i64, tpu.core_type = #tpu.core_type<tc>, window_params = [{transform_indices = @transform_0, window_bounds = array<i64: 16, 32>}, {transform_indices = @transform_1, window_bounds = array<i64: 32, 32>}, {transform_indices = @transform_2, window_bounds = array<i64: 32, 32>}, {transform_indices = @transform_3, window_bounds = array<i64: 32, 32>}, {transform_indices = @transform_4, window_bounds = array<i64: 1, 32>}, {transform_indices = @transform_5, window_bounds = array<i64: 1, 32>}, {transform_indices = @transform_6, window_bounds = array<i64: 1, 32>}, {transform_indices = @transform_7, window_bounds = array<i64: 16, 32>}, {transform_indices = @transform_8, window_bounds = array<i64: 16, 32>}, {transform_indices = @transform_9, window_bounds = array<i64: 16, 32>}]} {
    %c0_i32 = arith.constant 0 : i32
    %0 = arith.cmpi eq, %arg2, %c0_i32 : i32
    %1 = arith.extui %0 : i1 to i32
    %c0_i32_0 = arith.constant 0 : i32
    %2 = arith.cmpi ne, %1, %c0_i32_0 : i32
    scf.if %2 {
      %cst_24 = arith.constant 0.000000e+00 : f32
      %22 = vector.broadcast %cst_24 : f32 to vector<16x32xf32>
      %c0_25 = arith.constant 0 : index
      %c0_26 = arith.constant 0 : index
      %23 = vector.load %arg13[%c0_25, %c0_26] : memref<16x32xf32, #tpu.memory_space<vmem>>, vector<16x32xf32>
      tpu.vector_store %arg13[%c0_25, %c0_26], %22 {strides = array<i32>} : memref<16x32xf32, #tpu.memory_space<vmem>>, vector<16x32xf32>,
      %cst_27 = arith.constant 0.000000e+00 : f32
      %24 = vector.broadcast %cst_27 : f32 to vector<16x32xf32>
      %c0_28 = arith.constant 0 : index
      %c0_29 = arith.constant 0 : index
      %25 = vector.load %arg14[%c0_28, %c0_29] : memref<16x32xf32, #tpu.memory_space<vmem>>, vector<16x32xf32>
      tpu.vector_store %arg14[%c0_28, %c0_29], %24 {strides = array<i32>} : memref<16x32xf32, #tpu.memory_space<vmem>>, vector<16x32xf32>,
      %cst_30 = arith.constant 0.000000e+00 : f32
      %26 = vector.broadcast %cst_30 : f32 to vector<16x32xf32>
      %c0_31 = arith.constant 0 : index
      %c0_32 = arith.constant 0 : index
      %27 = vector.load %arg15[%c0_31, %c0_32] : memref<16x32xf32, #tpu.memory_space<vmem>>, vector<16x32xf32>
      tpu.vector_store %arg15[%c0_31, %c0_32], %26 {strides = array<i32>} : memref<16x32xf32, #tpu.memory_space<vmem>>, vector<16x32xf32>,
    } else {
    }
    %c0 = arith.constant 0 : index
    %c0_1 = arith.constant 0 : index
    %3 = vector.load %arg3[%c0, %c0_1] : memref<16x32xf32, #tpu.memory_space<vmem>>, vector<16x32xf32>
    %c0_2 = arith.constant 0 : index
    %c0_3 = arith.constant 0 : index
    %4 = vector.load %arg13[%c0_2, %c0_3] : memref<16x32xf32, #tpu.memory_space<vmem>>, vector<16x32xf32>
    %c0_4 = arith.constant 0 : index
    %c0_5 = arith.constant 0 : index
    %5 = vector.load %arg4[%c0_4, %c0_5] : memref<32x32xf32, #tpu.memory_space<vmem>>, vector<32x32xf32>
    %cst = arith.constant dense<0.000000e+00> : vector<16x32xf32>
    %6 = tpu.matmul %3, %5, %cst {dimension_numbers = #tpu.dot_dimension_numbers<[1], [0], [0], [1], [0, 0, 1, 1], [], []>} : vector<16x32xf32>, vector<32x32xf32>, vector<16x32xf32> -> vector<16x32xf32>
    %7 = arith.addf %4, %6 : vector<16x32xf32>
    %c0_6 = arith.constant 0 : index
    %c0_7 = arith.constant 0 : index
    %8 = vector.load %arg13[%c0_6, %c0_7] : memref<16x32xf32, #tpu.memory_space<vmem>>, vector<16x32xf32>
    tpu.vector_store %arg13[%c0_6, %c0_7], %7 {strides = array<i32>} : memref<16x32xf32, #tpu.memory_space<vmem>>, vector<16x32xf32>,
    %c0_8 = arith.constant 0 : index
    %c0_9 = arith.constant 0 : index
    %9 = vector.load %arg14[%c0_8, %c0_9] : memref<16x32xf32, #tpu.memory_space<vmem>>, vector<16x32xf32>
    %c0_10 = arith.constant 0 : index
    %c0_11 = arith.constant 0 : index
    %10 = vector.load %arg5[%c0_10, %c0_11] : memref<32x32xf32, #tpu.memory_space<vmem>>, vector<32x32xf32>
    %cst_12 = arith.constant dense<0.000000e+00> : vector<16x32xf32>
    %11 = tpu.matmul %3, %10, %cst_12 {dimension_numbers = #tpu.dot_dimension_numbers<[1], [0], [0], [1], [0, 0, 1, 1], [], []>} : vector<16x32xf32>, vector<32x32xf32>, vector<16x32xf32> -> vector<16x32xf32>
    %12 = arith.addf %9, %11 : vector<16x32xf32>
    %c0_13 = arith.constant 0 : index
    %c0_14 = arith.constant 0 : index
    %13 = vector.load %arg14[%c0_13, %c0_14] : memref<16x32xf32, #tpu.memory_space<vmem>>, vector<16x32xf32>
    tpu.vector_store %arg14[%c0_13, %c0_14], %12 {strides = array<i32>} : memref<16x32xf32, #tpu.memory_space<vmem>>, vector<16x32xf32>,
    %c0_15 = arith.constant 0 : index
    %c0_16 = arith.constant 0 : index
    %14 = vector.load %arg15[%c0_15, %c0_16] : memref<16x32xf32, #tpu.memory_space<vmem>>, vector<16x32xf32>
    %c0_17 = arith.constant 0 : index
    %c0_18 = arith.constant 0 : index
    %15 = vector.load %arg6[%c0_17, %c0_18] : memref<32x32xf32, #tpu.memory_space<vmem>>, vector<32x32xf32>
    %cst_19 = arith.constant dense<0.000000e+00> : vector<16x32xf32>
    %16 = tpu.matmul %3, %15, %cst_19 {dimension_numbers = #tpu.dot_dimension_numbers<[1], [0], [0], [1], [0, 0, 1, 1], [], []>} : vector<16x32xf32>, vector<32x32xf32>, vector<16x32xf32> -> vector<16x32xf32>
    %17 = arith.addf %14, %16 : vector<16x32xf32>
    %c0_20 = arith.constant 0 : index
    %c0_21 = arith.constant 0 : index
    %18 = vector.load %arg15[%c0_20, %c0_21] : memref<16x32xf32, #tpu.memory_space<vmem>>, vector<16x32xf32>
    tpu.vector_store %arg15[%c0_20, %c0_21], %17 {strides = array<i32>} : memref<16x32xf32, #tpu.memory_space<vmem>>, vector<16x32xf32>,
    %c0_i32_22 = arith.constant 0 : i32
    %19 = arith.cmpi eq, %arg2, %c0_i32_22 : i32
    %20 = arith.extui %19 : i1 to i32
    %c0_i32_23 = arith.constant 0 : i32
    %21 = arith.cmpi ne, %20, %c0_i32_23 : i32
    scf.if %21 {
      %c0_24 = arith.constant 0 : index
      %c0_25 = arith.constant 0 : index
      %22 = vector.load %arg13[%c0_24, %c0_25] : memref<16x32xf32, #tpu.memory_space<vmem>>, vector<16x32xf32>
      %c0_26 = arith.constant 0 : index
      %c0_27 = arith.constant 0 : index
      %23 = vector.load %arg7[%c0_26, %c0_27] : memref<1x32xf32, #tpu.memory_space<vmem>>, vector<1x32xf32>
      %24 = vector.broadcast %23 : vector<1x32xf32> to vector<16x32xf32>
      %25 = arith.addf %22, %24 : vector<16x32xf32>
      %c0_28 = arith.constant 0 : index
      %c0_29 = arith.constant 0 : index
      %26 = vector.load %arg10[%c0_28, %c0_29] : memref<16x32xf32, #tpu.memory_space<vmem>>, vector<16x32xf32>
      tpu.vector_store %arg10[%c0_28, %c0_29], %25 {strides = array<i32>} : memref<16x32xf32, #tpu.memory_space<vmem>>, vector<16x32xf32>,
      %c0_30 = arith.constant 0 : index
      %c0_31 = arith.constant 0 : index
      %27 = vector.load %arg14[%c0_30, %c0_31] : memref<16x32xf32, #tpu.memory_space<vmem>>, vector<16x32xf32>
      %c0_32 = arith.constant 0 : index
      %c0_33 = arith.constant 0 : index
      %28 = vector.load %arg8[%c0_32, %c0_33] : memref<1x32xf32, #tpu.memory_space<vmem>>, vector<1x32xf32>
      %29 = vector.broadcast %28 : vector<1x32xf32> to vector<16x32xf32>
      %30 = arith.addf %27, %29 : vector<16x32xf32>
      %c0_34 = arith.constant 0 : index
      %c0_35 = arith.constant 0 : index
      %31 = vector.load %arg11[%c0_34, %c0_35] : memref<16x32xf32, #tpu.memory_space<vmem>>, vector<16x32xf32>
      tpu.vector_store %arg11[%c0_34, %c0_35], %30 {strides = array<i32>} : memref<16x32xf32, #tpu.memory_space<vmem>>, vector<16x32xf32>,
      %c0_36 = arith.constant 0 : index
      %c0_37 = arith.constant 0 : index
      %32 = vector.load %arg15[%c0_36, %c0_37] : memref<16x32xf32, #tpu.memory_space<vmem>>, vector<16x32xf32>
      %c0_38 = arith.constant 0 : index
      %c0_39 = arith.constant 0 : index
      %33 = vector.load %arg9[%c0_38, %c0_39] : memref<1x32xf32, #tpu.memory_space<vmem>>, vector<1x32xf32>
      %34 = vector.broadcast %33 : vector<1x32xf32> to vector<16x32xf32>
      %35 = arith.addf %32, %34 : vector<16x32xf32>
      %c0_40 = arith.constant 0 : index
      %c0_41 = arith.constant 0 : index
      %36 = vector.load %arg12[%c0_40, %c0_41] : memref<16x32xf32, #tpu.memory_space<vmem>>, vector<16x32xf32>
      tpu.vector_store %arg12[%c0_40, %c0_41], %35 {strides = array<i32>} : memref<16x32xf32, #tpu.memory_space<vmem>>, vector<16x32xf32>,
    } else {
    }
    return
  }
  func.func @transform_0(%arg0: i32, %arg1: i32, %arg2: i32) -> (i32, i32) {
    %c0_i32 = arith.constant 0 : i32
    return %arg0, %arg2 : i32, i32
  }
  func.func @transform_1(%arg0: i32, %arg1: i32, %arg2: i32) -> (i32, i32) {
    %c0_i32 = arith.constant 0 : i32
    return %arg2, %arg1 : i32, i32
  }
  func.func @transform_2(%arg0: i32, %arg1: i32, %arg2: i32) -> (i32, i32) {
    %c0_i32 = arith.constant 0 : i32
    return %arg2, %arg1 : i32, i32
  }
  func.func @transform_3(%arg0: i32, %arg1: i32, %arg2: i32) -> (i32, i32) {
    %c0_i32 = arith.constant 0 : i32
    return %arg2, %arg1 : i32, i32
  }
  func.func @transform_4(%arg0: i32, %arg1: i32, %arg2: i32) -> (i32, i32) {
    %c0_i32 = arith.constant 0 : i32
    %c0_i32_0 = arith.constant 0 : i32
    return %c0_i32, %arg1 : i32, i32
  }
  func.func @transform_5(%arg0: i32, %arg1: i32, %arg2: i32) -> (i32, i32) {
    %c0_i32 = arith.constant 0 : i32
    %c0_i32_0 = arith.constant 0 : i32
    return %c0_i32, %arg1 : i32, i32
  }
  func.func @transform_6(%arg0: i32, %arg1: i32, %arg2: i32) -> (i32, i32) {
    %c0_i32 = arith.constant 0 : i32
    %c0_i32_0 = arith.constant 0 : i32
    return %c0_i32, %arg1 : i32, i32
  }
  func.func @transform_7(%arg0: i32, %arg1: i32, %arg2: i32) -> (i32, i32) {
    %c0_i32 = arith.constant 0 : i32
    return %arg0, %arg1 : i32, i32
  }
  func.func @transform_8(%arg0: i32, %arg1: i32, %arg2: i32) -> (i32, i32) {
    %c0_i32 = arith.constant 0 : i32
    return %arg0, %arg1 : i32, i32
  }
  func.func @transform_9(%arg0: i32, %arg1: i32, %arg2: i32) -> (i32, i32) {
    %c0_i32 = arith.constant 0 : i32
    return %arg0, %arg1 : i32, i32
  }
}

</mosaic_0001>

<llo_original>
// kernel: tpu_custom_call.1
$region0: #{tpu_custom_call.1}
  #allocation0 [shape = 'u32[]', space=smem, size = 0x4, offset = 0x4, fixed_abs, tag = 'smem constant byte address 0x4 - core index']
  #allocation1 [shape = 'u32[72,128]{1,0:T(1,128)}', space=vmem, size = 0x9000, scoped, tag = 'internal scratch']
  #allocation2 [shape = 'f32[16,32]{1,0:T(8,128)}', space=vmem, size = 0x2000, scoped, tag = 'scratch operand']
  #allocation3 [shape = 'f32[16,32]{1,0:T(8,128)}', space=vmem, size = 0x2000, scoped, tag = 'scratch operand']
  #allocation4 [shape = 'f32[16,32]{1,0:T(8,128)}', space=vmem, size = 0x2000, scoped, tag = 'scratch operand']
  %s0 = inlined_call_operand.hbm [shape: f32[16,32], index: 0, kind: input, shape index: {}]
  %s1 = inlined_call_operand.hbm [shape: f32[32,32], index: 1, kind: input, shape index: {}]
  %s2 = inlined_call_operand.hbm [shape: f32[32,32], index: 2, kind: input, shape index: {}]
  %s3 = inlined_call_operand.hbm [shape: f32[32,32], index: 3, kind: input, shape index: {}]
  %s4 = inlined_call_operand.vmem [shape: f32[1,32], index: 4, kind: input, shape index: {}]
  %s5 = inlined_call_operand.vmem [shape: f32[1,32], index: 5, kind: input, shape index: {}]
  %s6 = inlined_call_operand.vmem [shape: f32[1,32], index: 6, kind: input, shape index: {}]
  %s7 = inlined_call_operand.hbm [shape: f32[16,32], index: 7, kind: output, shape index: {0}]
  %s8 = inlined_call_operand.hbm [shape: f32[16,32], index: 8, kind: output, shape index: {1}]
  %s9 = inlined_call_operand.hbm [shape: f32[16,32], index: 9, kind: output, shape index: {2}]
  %10 = xla_tuple %s7, %s8, %s9
  %s11 = sld [smem:[#allocation0]]
  $region78: #{tpu_custom_call.1} parent=0
    _
  %s13 = ssub.s32 1, %s11
  %s14 = scalar_select 0, %s13, %s11
  $region1: #{tpu_custom_call.1} parent=0
    #allocation5 [shape = 'u8[8192]{0}', space=vmem, size = 0x2000, scoped, tag = 'input window, operand 0, single buffered']
    #allocation6 [shape = 's32[1]{0}', space=sflag, size = 0x4, scoped, tag = 'scoped memory for tpu_custom_call.1']
    #allocation7 [shape = 's32[1]{0}', space=sflag, size = 0x4, scoped, tag = 'scoped memory for tpu_custom_call.1']
    #allocation8 [shape = 'u8[16384]{0}', space=vmem, size = 0x4000, scoped, tag = 'input window, operand 1, single buffered']
    #allocation9 [shape = 's32[1]{0}', space=sflag, size = 0x4, scoped, tag = 'scoped memory for tpu_custom_call.1']
    #allocation10 [shape = 'u8[16384]{0}', space=vmem, size = 0x4000, scoped, tag = 'input window, operand 2, single buffered']
    #allocation11 [shape = 'u8[16384]{0}', space=vmem, size = 0x4000, scoped, tag = 'input window, operand 3, single buffered']
    #allocation12 [shape = 's32[1]{0}', space=sflag, size = 0x4, scoped, tag = 'scoped memory for tpu_custom_call.1']
    #allocation13 [shape = 'u8[8192]{0}', space=vmem, size = 0x2000, scoped, tag = 'output window, operand 0, single buffered']
    #allocation14 [shape = 'u8[8192]{0}', space=vmem, size = 0x2000, scoped, tag = 'output window, operand 1, single buffered']
    #allocation15 [shape = 's32[1]{0}', space=sflag, size = 0x4, scoped, tag = 'scoped memory for tpu_custom_call.1']
    #allocation16 [shape = 'u8[8192]{0}', space=vmem, size = 0x2000, scoped, tag = 'output window, operand 2, single buffered']
    %15 = vsyncpa [#allocation6], 0
    %16 = vsyncpa [#allocation9], 0
    %17 = vsyncpa [#allocation12], 0
    %18 = vsyncpa [#allocation7], 0
    %19 = vsyncpa [#allocation15], 0
    // Predicated region
    $region2: #{tpu_custom_call.1} parent=1 // pred_check
      _
    $region3: #{tpu_custom_call.1} parent=1 // pred_check_branch
      %21 = sbr.rel (0) target = $region5
    $region4: #{tpu_custom_call.1} parent=1 // pred_region
      %23 = vsyncadd [#allocation6], 0
      %s24 = sshll.u32 %s0, 4
      %s25 = int_to_ptr.hbm [resolvable:$true] %s24
      %s26 = sshll.u32 [#allocation5], 4
      %s27 = int_to_ptr.vmem [resolvable:$true] %s26
      %32 = dma.hbm_to_vmem [thread:$0]  %s25, 256, %s27, [#allocation6], 128, 128, 8
    $region5: #{tpu_custom_call.1} parent=1 // pred_fallthru
      _
    // Predicated region
    $region6: #{tpu_custom_call.1} parent=1 // pred_check
      _
    $region7: #{tpu_custom_call.1} parent=1 // pred_check_branch
      %34 = sbr.rel (0) target = $region9
    $region8: #{tpu_custom_call.1} parent=1 // pred_region
      %36 = vsyncadd [#allocation9], 0
      %s37 = sshll.u32 %s1, 4
      %s38 = int_to_ptr.hbm [resolvable:$true] %s37
      %s39 = sshll.u32 [#allocation8], 4
      %s40 = int_to_ptr.vmem [resolvable:$true] %s39
      %45 = dma.hbm_to_vmem [thread:$0]  %s38, 512, %s40, [#allocation9], 128, 128, 8
    $region9: #{tpu_custom_call.1} parent=1 // pred_fallthru
      _
    // Predicated region
    $region10: #{tpu_custom_call.1} parent=1 // pred_check
      _
    $region11: #{tpu_custom_call.1} parent=1 // pred_check_branch
      %47 = sbr.rel (0) target = $region13
    $region12: #{tpu_custom_call.1} parent=1 // pred_region
      %49 = vsyncadd [#allocation9], 0
      %s50 = sshll.u32 %s2, 4
      %s51 = int_to_ptr.hbm [resolvable:$true] %s50
      %s52 = sshll.u32 [#allocation10], 4
      %s53 = int_to_ptr.vmem [resolvable:$true] %s52
      %58 = dma.hbm_to_vmem [thread:$0]  %s51, 512, %s53, [#allocation9], 128, 128, 8
    $region13: #{tpu_custom_call.1} parent=1 // pred_fallthru
      _
    // Predicated region
    $region14: #{tpu_custom_call.1} parent=1 // pred_check
      _
    $region15: #{tpu_custom_call.1} parent=1 // pred_check_branch
      %60 = sbr.rel (0) target = $region17
    $region16: #{tpu_custom_call.1} parent=1 // pred_region
      %62 = vsyncadd [#allocation12], 0
      %s63 = sshll.u32 %s3, 4
      %s64 = int_to_ptr.hbm [resolvable:$true] %s63
      %s65 = sshll.u32 [#allocation11], 4
      %s66 = int_to_ptr.vmem [resolvable:$true] %s65
      %71 = dma.hbm_to_vmem [thread:$0]  %s64, 512, %s66, [#allocation12], 128, 128, 8
    $region17: #{tpu_custom_call.1} parent=1 // pred_fallthru
      _
    // Predicated region
    $region18: #{tpu_custom_call.1} parent=1 // pred_check
      _
    $region19: #{tpu_custom_call.1} parent=1 // pred_check_branch
      %73 = sbr.rel (0) target = $region21
    $region20: #{tpu_custom_call.1} parent=1 // pred_region
      _
    $region21: #{tpu_custom_call.1} parent=1 // pred_fallthru
      _
    // Predicated region
    $region22: #{tpu_custom_call.1} parent=1 // pred_check
      _
    $region23: #{tpu_custom_call.1} parent=1 // pred_check_branch
      %75 = sbr.rel (0) target = $region25
    $region24: #{tpu_custom_call.1} parent=1 // pred_region
      _
    $region25: #{tpu_custom_call.1} parent=1 // pred_fallthru
      _
    // Predicated region
    $region26: #{tpu_custom_call.1} parent=1 // pred_check
      _
    $region27: #{tpu_custom_call.1} parent=1 // pred_check_branch
      %77 = sbr.rel (0) target = $region29
    $region28: #{tpu_custom_call.1} parent=1 // pred_region
      _
    $region29: #{tpu_custom_call.1} parent=1 // pred_fallthru
      _
    // Predicated region
    $region30: #{tpu_custom_call.1} parent=1 // pred_check
      _
    $region31: #{tpu_custom_call.1} parent=1 // pred_check_branch
      %79 = sbr.rel (0) target = $region33
    $region32: #{tpu_custom_call.1} parent=1 // pred_region
      %81 = dma.done [#allocation6], 256
    $region33: #{tpu_custom_call.1} parent=1 // pred_fallthru
      _
    // Predicated region
    $region34: #{tpu_custom_call.1} parent=1 // pred_check
      _
    $region35: #{tpu_custom_call.1} parent=1 // pred_check_branch
      %83 = sbr.rel (0) target = $region37
    $region36: #{tpu_custom_call.1} parent=1 // pred_region
      %85 = dma.done [#allocation9], 512
    $region37: #{tpu_custom_call.1} parent=1 // pred_fallthru
      _
    // Predicated region
    $region38: #{tpu_custom_call.1} parent=1 // pred_check
      _
    $region39: #{tpu_custom_call.1} parent=1 // pred_check_branch
      %87 = sbr.rel (0) target = $region41
    $region40: #{tpu_custom_call.1} parent=1 // pred_region
      %89 = dma.done [#allocation9], 512
    $region41: #{tpu_custom_call.1} parent=1 // pred_fallthru
      _
    // Predicated region
    $region42: #{tpu_custom_call.1} parent=1 // pred_check
      _
    $region43: #{tpu_custom_call.1} parent=1 // pred_check_branch
      %91 = sbr.rel (0) target = $region45
    $region44: #{tpu_custom_call.1} parent=1 // pred_region
      %93 = dma.done [#allocation12], 512
    $region45: #{tpu_custom_call.1} parent=1 // pred_fallthru
      _
    %p94 = scmp.eq.s32.totalorder 0, 0
    // Predicated region
    $region46: #{tpu_custom_call.1} parent=1 // pred_check
      %p95 = pneg %p94
    $region47: #{tpu_custom_call.1} parent=1 // pred_check_branch
      %97 = sbr.rel (%p95) target = $region49
    $region48: #{tpu_custom_call.1} parent=1 // pred_region
      %vm98 = vcmask 261120
      %99 = vst.msk [vmem:[#allocation2] sm:$0xff] %vm98, 0.0
      %100 = vst.msk [vmem:[#allocation2 + $0x8] sm:$0xff] %vm98, 0.0
      %101 = vst.msk [vmem:[#allocation3] sm:$0xff] %vm98, 0.0
      %102 = vst.msk [vmem:[#allocation3 + $0x8] sm:$0xff] %vm98, 0.0
      %103 = vst.msk [vmem:[#allocation4] sm:$0xff] %vm98, 0.0
      %104 = vst.msk [vmem:[#allocation4 + $0x8] sm:$0xff] %vm98, 0.0
    $region49: #{tpu_custom_call.1} parent=1 // pred_fallthru
      _
    %v105 = vld [vmem:[#allocation5] sm:$0xff]
    %v106 = vld [vmem:[#allocation5 + $0x8] sm:$0xff]
    %v107 = vld [vmem:[#allocation2] sm:$0xff]
    %v108 = vld [vmem:[#allocation2 + $0x8] sm:$0xff]
    %v109 = vld [vmem:[#allocation8] sm:$0xff]
    %v110 = vld [vmem:[#allocation8 + $0x8] sm:$0xff]
    %v111 = vld [vmem:[#allocation8 + $0x10] sm:$0xff]
    %v112 = vld [vmem:[#allocation8 + $0x18] sm:$0xff]
    %vm113 = vcmask 261120
    %v115 = vsel %vm113, %v105, 0
    %v118 = vsel %vm113, %v106, 0
    %120 = vmatpush.msra.mxu0 0.0
    %121 = vmatpush.msra.mxu0 0.0
    %122 = vmatpush.msra.mxu0 0.0
    %123 = vmatpush.msra.mxu0 0.0
    %124 = vmatpush.msra.mxu0 0.0
    %125 = vmatpush.msra.mxu0 0.0
    %126 = vmatpush.msra.mxu0 0.0
    %127 = vmatpush.msra.mxu0 0.0
    %128 = vmatpush.msra.mxu0 0.0
    %129 = vmatpush.msra.mxu0 0.0
    %130 = vmatpush.msra.mxu0 0.0
    %131 = vmatpush.msra.mxu0 0.0
    %132 = vmatpush.msra.mxu0 %v112
    %133 = vmatpush.msra.mxu0 %v111
    %134 = vmatpush.msra.mxu0 %v110
    %135 = vmatpush.msra.mxu0 %v109
    %136 = vmatmul.f32.gmra.mxu0 %v115
    %v137 = vpop.f32.mrf.mxu0
    %v138 = vadd.f32 0.0, %v137
    %139 = vmatmul.f32.gmra.mxu0 %v118
    %v140 = vpop.f32.mrf.mxu0
    %v141 = vadd.f32 0.0, %v140
    %142 = vdwg.mxu0
    %v143 = vadd.f32 %v107, %v138
    %v144 = vadd.f32 %v108, %v141
    %145 = vst.msk [vmem:[#allocation2] sm:$0xff] %vm113, %v143
    %146 = vst.msk [vmem:[#allocation2 + $0x8] sm:$0xff] %vm113, %v144
    %v147 = vld [vmem:[#allocation3] sm:$0xff]
    %v148 = vld [vmem:[#allocation3 + $0x8] sm:$0xff]
    %v149 = vld [vmem:[#allocation10] sm:$0xff]
    %v150 = vld [vmem:[#allocation10 + $0x8] sm:$0xff]
    %v151 = vld [vmem:[#allocation10 + $0x10] sm:$0xff]
    %v152 = vld [vmem:[#allocation10 + $0x18] sm:$0xff]
    %153 = vmatpush.msra.mxu0 0.0
    %154 = vmatpush.msra.mxu0 0.0
    %155 = vmatpush.msra.mxu0 0.0
    %156 = vmatpush.msra.mxu0 0.0
    %157 = vmatpush.msra.mxu0 0.0
    %158 = vmatpush.msra.mxu0 0.0
    %159 = vmatpush.msra.mxu0 0.0
    %160 = vmatpush.msra.mxu0 0.0
    %161 = vmatpush.msra.mxu0 0.0
    %162 = vmatpush.msra.mxu0 0.0
    %163 = vmatpush.msra.mxu0 0.0
    %164 = vmatpush.msra.mxu0 0.0
    %165 = vmatpush.msra.mxu0 %v152
    %166 = vmatpush.msra.mxu0 %v151
    %167 = vmatpush.msra.mxu0 %v150
    %168 = vmatpush.msra.mxu0 %v149
    %169 = vmatmul.f32.gmra.mxu0 %v115
    %v170 = vpop.f32.mrf.mxu0
    %v171 = vadd.f32 0.0, %v170
    %172 = vmatmul.f32.gmra.mxu0 %v118
    %v173 = vpop.f32.mrf.mxu0
    %v174 = vadd.f32 0.0, %v173
    %175 = vdwg.mxu0
    %v176 = vadd.f32 %v147, %v171
    %v177 = vadd.f32 %v148, %v174
    %178 = vst.msk [vmem:[#allocation3] sm:$0xff] %vm113, %v176
    %179 = vst.msk [vmem:[#allocation3 + $0x8] sm:$0xff] %vm113, %v177
    %v180 = vld [vmem:[#allocation4] sm:$0xff]
    %v181 = vld [vmem:[#allocation4 + $0x8] sm:$0xff]
    %v182 = vld [vmem:[#allocation11] sm:$0xff]
    %v183 = vld [vmem:[#allocation11 + $0x8] sm:$0xff]
    %v184 = vld [vmem:[#allocation11 + $0x10] sm:$0xff]
    %v185 = vld [vmem:[#allocation11 + $0x18] sm:$0xff]
    %186 = vmatpush.msra.mxu0 0.0
    %187 = vmatpush.msra.mxu0 0.0
    %188 = vmatpush.msra.mxu0 0.0
    %189 = vmatpush.msra.mxu0 0.0
    %190 = vmatpush.msra.mxu0 0.0
    %191 = vmatpush.msra.mxu0 0.0
    %192 = vmatpush.msra.mxu0 0.0
    %193 = vmatpush.msra.mxu0 0.0
    %194 = vmatpush.msra.mxu0 0.0
    %195 = vmatpush.msra.mxu0 0.0
    %196 = vmatpush.msra.mxu0 0.0
    %197 = vmatpush.msra.mxu0 0.0
    %198 = vmatpush.msra.mxu0 %v185
    %199 = vmatpush.msra.mxu0 %v184
    %200 = vmatpush.msra.mxu0 %v183
    %201 = vmatpush.msra.mxu0 %v182
    %202 = vmatmul.f32.gmra.mxu0 %v115
    %v203 = vpop.f32.mrf.mxu0
    %v204 = vadd.f32 0.0, %v203
    %205 = vmatmul.f32.gmra.mxu0 %v118
    %v206 = vpop.f32.mrf.mxu0
    %v207 = vadd.f32 0.0, %v206
    %208 = vdwg.mxu0
    %v209 = vadd.f32 %v180, %v204
    %v210 = vadd.f32 %v181, %v207
    %211 = vst.msk [vmem:[#allocation4] sm:$0xff] %vm113, %v209
    %212 = vst.msk [vmem:[#allocation4 + $0x8] sm:$0xff] %vm113, %v210
    // Predicated region
    $region50: #{tpu_custom_call.1} parent=1 // pred_check
      %p213 = pneg %p94
    $region51: #{tpu_custom_call.1} parent=1 // pred_check_branch
      %215 = sbr.rel (%p213) target = $region53
    $region52: #{tpu_custom_call.1} parent=1 // pred_region
      %v216 = vld [vmem:[#allocation2] sm:$0xff]
      %v217 = vld [vmem:[#allocation2 + $0x8] sm:$0xff]
      %v218 = vld [vmem:[%s4] sm:$0x1]
      %v220 = vperm.slane %v218, 0
      %v222 = vadd.f32 %v216, %v220
      %v223 = vadd.f32 %v217, %v220
      %224 = vst.msk [vmem:[#allocation13] sm:$0xff] %vm113, %v222
      %225 = vst.msk [vmem:[#allocation13 + $0x8] sm:$0xff] %vm113, %v223
      %v226 = vld [vmem:[#allocation3] sm:$0xff]
      %v227 = vld [vmem:[#allocation3 + $0x8] sm:$0xff]
      %v228 = vld [vmem:[%s5] sm:$0x1]
      %v230 = vperm.slane %v228, 0
      %v232 = vadd.f32 %v226, %v230
      %v233 = vadd.f32 %v227, %v230
      %234 = vst.msk [vmem:[#allocation14] sm:$0xff] %vm113, %v232
      %235 = vst.msk [vmem:[#allocation14 + $0x8] sm:$0xff] %vm113, %v233
      %v236 = vld [vmem:[#allocation4] sm:$0xff]
      %v237 = vld [vmem:[#allocation4 + $0x8] sm:$0xff]
      %v238 = vld [vmem:[%s6] sm:$0x1]
      %v240 = vperm.slane %v238, 0
      %v242 = vadd.f32 %v236, %v240
      %v243 = vadd.f32 %v237, %v240
      %244 = vst.msk [vmem:[#allocation16] sm:$0xff] %vm113, %v242
      %245 = vst.msk [vmem:[#allocation16 + $0x8] sm:$0xff] %vm113, %v243
    $region53: #{tpu_custom_call.1} parent=1 // pred_fallthru
      _
    // Predicated region
    $region54: #{tpu_custom_call.1} parent=1 // pred_check
      _
    $region55: #{tpu_custom_call.1} parent=1 // pred_check_branch
      %247 = sbr.rel (0) target = $region57
    $region56: #{tpu_custom_call.1} parent=1 // pred_region
      %249 = vsyncadd [#allocation7], 0
      %s250 = sshll.u32 [#allocation13], 4
      %s251 = int_to_ptr.vmem [resolvable:$true] %s250
      %s252 = sshll.u32 %s7, 4
      %s253 = int_to_ptr.hbm [resolvable:$true] %s252
      %258 = dma.vmem_to_hbm [thread:$0]  %s251, 256, %s253, [#allocation7], 128, 128, 8
    $region57: #{tpu_custom_call.1} parent=1 // pred_fallthru
      _
    // Predicated region
    $region58: #{tpu_custom_call.1} parent=1 // pred_check
      _
    $region59: #{tpu_custom_call.1} parent=1 // pred_check_branch
      %260 = sbr.rel (0) target = $region61
    $region60: #{tpu_custom_call.1} parent=1 // pred_region
      %262 = vsyncadd [#allocation15], 0
      %s263 = sshll.u32 [#allocation14], 4
      %s264 = int_to_ptr.vmem [resolvable:$true] %s263
      %s265 = sshll.u32 %s8, 4
      %s266 = int_to_ptr.hbm [resolvable:$true] %s265
      %271 = dma.vmem_to_hbm [thread:$0]  %s264, 256, %s266, [#allocation15], 128, 128, 8
    $region61: #{tpu_custom_call.1} parent=1 // pred_fallthru
      _
    // Predicated region
    $region62: #{tpu_custom_call.1} parent=1 // pred_check
      _
    $region63: #{tpu_custom_call.1} parent=1 // pred_check_branch
      %273 = sbr.rel (0) target = $region65
    $region64: #{tpu_custom_call.1} parent=1 // pred_region
      %275 = vsyncadd [#allocation15], 0
      %s276 = sshll.u32 [#allocation16], 4
      %s277 = int_to_ptr.vmem [resolvable:$true] %s276
      %s278 = sshll.u32 %s9, 4
      %s279 = int_to_ptr.hbm [resolvable:$true] %s278
      %284 = dma.vmem_to_hbm [thread:$0]  %s277, 256, %s279, [#allocation15], 128, 128, 8
    $region65: #{tpu_custom_call.1} parent=1 // pred_fallthru
      _
    // Predicated region
    $region66: #{tpu_custom_call.1} parent=1 // pred_check
      _
    $region67: #{tpu_custom_call.1} parent=1 // pred_check_branch
      %286 = sbr.rel (0) target = $region69
    $region68: #{tpu_custom_call.1} parent=1 // pred_region
      %288 = dma.done [#allocation7], 256
    $region69: #{tpu_custom_call.1} parent=1 // pred_fallthru
      _
    // Predicated region
    $region70: #{tpu_custom_call.1} parent=1 // pred_check
      _
    $region71: #{tpu_custom_call.1} parent=1 // pred_check_branch
      %290 = sbr.rel (0) target = $region73
    $region72: #{tpu_custom_call.1} parent=1 // pred_region
      %292 = dma.done [#allocation15], 256
    $region73: #{tpu_custom_call.1} parent=1 // pred_fallthru
      _
    // Predicated region
    $region74: #{tpu_custom_call.1} parent=1 // pred_check
      _
    $region75: #{tpu_custom_call.1} parent=1 // pred_check_branch
      %294 = sbr.rel (0) target = $region77
    $region76: #{tpu_custom_call.1} parent=1 // pred_region
      %296 = dma.done [#allocation15], 256
    $region77: #{tpu_custom_call.1} parent=1 // pred_fallthru
      _
    %297 = vsyncpa [#allocation6], 1
    %298 = vsyncpa [#allocation9], 1
    %299 = vsyncpa [#allocation12], 1
    %300 = vsyncpa [#allocation7], 1
    %301 = vsyncpa [#allocation15], 1

</llo_original>
